<compile_context>
chip_gen: v5e
topology: v5e:2x2
jax: 0.10.0
libtpu: 0.0.40
codegen_flags: <defaults>
</compile_context>

<pallas_src>
import math

import jax
import jax.numpy as jnp
from jax.experimental import pallas as pl
from jax.experimental.pallas import tpu as pltpu


def _round_up(x: int, m: int) -> int:
    return ((x + m - 1) // m) * m


_DEFAULT_VMEM_BUDGET = 48 * 1024 * 1024   # working-set target (headroom on v7x 64 MiB)
_DEFAULT_VMEM_LIMIT = 64 * 1024 * 1024    # scoped limit; v5e/v6e callers may raise to ~110 MiB


# ----------------------------------------------------------------------------
# One-time parameter prep (OUTSIDE the hot path)
# ----------------------------------------------------------------------------
def prepare_params(weight_pt, bias, *, compute_dtype=jnp.float32):
    """PyTorch nn.Linear params -> kernel-ready params.

    weight_pt: (n_out, d_model)  PyTorch layout
    bias:      (n_out,) or None
    Returns (w_kn, bias_f32):
      w_kn:     (d_model, n_pad) in compute_dtype, n_pad = round_up(n_out, 128)
      bias_f32: (1, n_pad) float32 or None
    """
    n_out, d_model = weight_pt.shape
    n_pad = _round_up(n_out, 128)
    w_kn = jnp.asarray(weight_pt).T.astype(compute_dtype)
    if n_pad != n_out:
        w_kn = jnp.pad(w_kn, ((0, 0), (0, n_pad - n_out)))
    # TODO(synk): for odd d_model (e.g. 96) also pad K to a multiple of 128/256
    # here — but that requires the upstream producer of x to emit K-padded
    # activations, so it is left to the caller.
    b = None
    if bias is not None:
        b = jnp.asarray(bias, jnp.float32)
        if n_pad != n_out:
            b = jnp.pad(b, (0, n_pad - n_out))
        b = b.reshape(1, n_pad)
    return w_kn, b


# ----------------------------------------------------------------------------
# Kernels
# ----------------------------------------------------------------------------
def _linear_kernel(x_ref, w_ref, b_ref, o_ref):
    # x:(tm,K)  w:(K,tn)  b:(1,tn) f32  o:(tm,tn)
    y = jnp.dot(x_ref[...], w_ref[...], preferred_element_type=jnp.float32)
    o_ref[...] = (y + b_ref[...]).astype(o_ref.dtype)


def _linear_kernel_nobias(x_ref, w_ref, o_ref):
    o_ref[...] = jnp.dot(
        x_ref[...], w_ref[...], preferred_element_type=jnp.float32
    ).astype(o_ref.dtype)


def _linear_kernel_ktiled(x_ref, w_ref, b_ref, o_ref, acc_ref):
    # x:(tm,tk)  w:(tk,tn)  acc:(tm,tn) f32 — K is the innermost ("arbitrary") axis.
    k = pl.program_id(2)

    @pl.when(k == 0)
    def _():
        acc_ref[...] = jnp.zeros_like(acc_ref)

    acc_ref[...] += jnp.dot(x_ref[...], w_ref[...], preferred_element_type=jnp.float32)

    @pl.when(k == pl.num_programs(2) - 1)
    def _():
        o_ref[...] = (acc_ref[...] + b_ref[...]).astype(o_ref.dtype)


def _linear_kernel_ktiled_nobias(x_ref, w_ref, o_ref, acc_ref):
    k = pl.program_id(2)

    @pl.when(k == 0)
    def _():
        acc_ref[...] = jnp.zeros_like(acc_ref)

    acc_ref[...] += jnp.dot(x_ref[...], w_ref[...], preferred_element_type=jnp.float32)

    @pl.when(k == pl.num_programs(2) - 1)
    def _():
        o_ref[...] = acc_ref[...].astype(o_ref.dtype)


# ----------------------------------------------------------------------------
# Tile selection
# ----------------------------------------------------------------------------
def _select_tiling(M, K, n_pad, itemsize, tile_m, tile_n, tile_k, vmem_budget):
    sub = max(8, 32 // itemsize)                 # sublane: 8 f32, 16 bf16, 32 int8/fp8
    tm = min(_round_up(tile_m, sub), _round_up(M, sub))

    # Weight-resident fast path: hold the whole (K, n_pad) weight in VMEM when
    # it is small (typical MHA sizes) so it is DMA'd exactly once; otherwise
    # stream (K, tile_n) slabs.
    if K * n_pad * itemsize <= min(vmem_budget // 4, 16 * 1024 * 1024):
        tn = n_pad
    else:
        tn = min(_round_up(tile_n, 128), n_pad)

    def ws(tm_, tn_, tk_):
        # double-buffered x & weight slabs + double-buffered output + f32 acc
        return (2 * tm_ * tk_ + 2 * tk_ * tn_ + 2 * tm_ * tn_) * itemsize + tm_ * tn_ * 4

    # Shrink tn first (x is read once regardless of tn), then tile K (adds the
    # accumulator path), then tm (worsens weight re-streaming) as last resort.
    while tn > 256 and ws(tm, tn, K) > vmem_budget:
        tn = max(256, _round_up(tn // 2, 128))

    tk = K
    if tile_k is not None and 0 < tile_k < K and K % tile_k == 0:
        tk = tile_k
    while tk % 2 == 0 and tk > 1024 and ws(tm, tn, tk) > vmem_budget:
        tk //= 2          # halving keeps K % tk == 0: no garbage on the reduction axis

    while tm > sub and ws(tm, tn, tk) > vmem_budget:
        tm = max(sub, _round_up(tm // 2, sub))

    # v7x megacore: if the grid would collapse to a single block, split N so
    # both TensorCores get work (costs one ~0.35us extra step on 1-TC chips).
    if pl.cdiv(M, tm) == 1 and tn == n_pad and n_pad >= 256:
        tn = _round_up(n_pad // 2, 128)

    return tm, tn, tk


# ----------------------------------------------------------------------------
# Hot path
# ----------------------------------------------------------------------------
def prepare_for_mha(
    x,
    w_kn,
    bias_f32,
    n_heads,
    d_heads,
    *,
    tile_m=1024,          # x read once; larger tm cuts weight re-streaming (v6e: try 2048)
    tile_n=512,           # lane-dense slab; >=256 is enough for the MXU
    tile_k=None,          # set (divisor of d_model) to force the K-accumulator path
    vmem_budget_bytes=_DEFAULT_VMEM_BUDGET,
    vmem_limit_bytes=_DEFAULT_VMEM_LIMIT,
):
    """
    x:        (..., d_model)              e.g. (seq_len, batch, d_model)
    w_kn:     (d_model, n_pad)            from prepare_params (same dtype as x)
    bias_f32: (1, n_pad) float32 or None  from prepare_params
    returns   (..., n_heads, d_heads)
    """
    head_shape = x.shape[:-1]
    d_model = x.shape[-1]
    n_out = n_heads * d_heads
    K, n_pad = w_kn.shape
    assert K == d_model, "weight must be (d_model, n_pad); run prepare_params"
    assert n_out <= n_pad and n_pad == _round_up(n_out, 128), "run prepare_params first"
    assert w_kn.dtype == x.dtype, "x and weight must share the compute dtype (no silent promotion)"
    if bias_f32 is not None:
        assert bias_f32.shape == (1, n_pad) and bias_f32.dtype == jnp.float32

    x2d = x.reshape(-1, d_model)
    M = x2d.shape[0]
    itemsize = jnp.dtype(x.dtype).itemsize
    tm, tn, tk = _select_tiling(
        M, K, n_pad, itemsize, tile_m, tile_n, tile_k, vmem_budget_bytes
    )
    gm, gn, gk = pl.cdiv(M, tm), pl.cdiv(n_pad, tn), K // tk
    use_bias = bias_f32 is not None
    operands = [x2d, w_kn] + ([bias_f32] if use_bias else [])

    if gk == 1:
        # 2-D grid (i outer, j inner): x row tile stays resident across the j
        # sweep; only the weight slab streams.  Partial last row block is
        # masked on store, so no pre-padding of x is needed.
        in_specs = [
            pl.BlockSpec((tm, K), lambda i, j: (i, 0)),
            pl.BlockSpec((K, tn), lambda i, j: (0, j)),
        ]
        if use_bias:
            in_specs.append(pl.BlockSpec((1, tn), lambda i, j: (0, j)))
        out_specs = pl.BlockSpec((tm, tn), lambda i, j: (i, j))
        grid = (gm, gn)
        scratch_shapes = []
        kernel = _linear_kernel if use_bias else _linear_kernel_nobias
        semantics = ("parallel", "parallel")
    else:
        # 3-D grid with K innermost and an f32 VMEM accumulator.  tk divides K
        # exactly, so only the (masked) M axis ever contains garbage.
        in_specs = [
            pl.BlockSpec((tm, tk), lambda i, j, k: (i, k)),
            pl.BlockSpec((tk, tn), lambda i, j, k: (k, j)),
        ]
        if use_bias:
            in_specs.append(pl.BlockSpec((1, tn), lambda i, j, k: (0, j)))
        out_specs = pl.BlockSpec((tm, tn), lambda i, j, k: (i, j))
        grid = (gm, gn, gk)
        scratch_shapes = [pltpu.VMEM((tm, tn), jnp.float32)]
        kernel = _linear_kernel_ktiled if use_bias else _linear_kernel_ktiled_nobias
        semantics = ("parallel", "parallel", "arbitrary")

    out2d = pl.pallas_call(
        kernel,
        out_shape=jax.ShapeDtypeStruct((M, n_pad), x.dtype),
        grid_spec=pltpu.PrefetchScalarGridSpec(
            num_scalar_prefetch=0,
            grid=grid,
            in_specs=in_specs,
            out_specs=out_specs,
            scratch_shapes=scratch_shapes,
        ),
        compiler_params=pltpu.CompilerParams(
            dimension_semantics=semantics,
            vmem_limit_bytes=vmem_limit_bytes,
        ),
    )(*operands)

    if n_pad != n_out:
        # Lane-only slice; absent entirely when n_out is already a multiple of 128.
        out2d = out2d[:, :n_out]
    return out2d.reshape(*head_shape, n_heads, d_heads)


# ----------------------------------------------------------------------------
# Param init (nn.Linear-style) and self-test
# ----------------------------------------------------------------------------
def init_params(key, d_model, n_heads, d_heads, use_bias):
    """uniform(-1/sqrt(in), 1/sqrt(in)) in PyTorch (n_out, d_model) layout."""
    n_out = n_heads * d_heads
    kw, kb = jax.random.split(key)
    bound = 1.0 / math.sqrt(d_model)
    weight_pt = jax.random.uniform(kw, (n_out, d_model), jnp.float32, -bound, bound)
    bias = (
        jax.random.uniform(kb, (n_out,), jnp.float32, -bound, bound)
        if use_bias
        else None
    )
    return weight_pt, bias


if __name__ == "__main__":
    key = jax.random.PRNGKey(0)
    kx1, kp1, kx2, kp2, kx3, kp3 = jax.random.split(key, 6)

    # --- Test 1: lane-dense n_out (=128), bias, weight-resident single-step --
    seq_len, batch, d_model = 8, 2, 128
    n_heads, d_heads = 4, 32
    x = jax.random.normal(kx1, (seq_len, batch, d_model), jnp.float32)
    weight_pt, bias = init_params(kp1, d_model, n_heads, d_heads, use_bias=True)
    w_kn, b_f32 = prepare_params(weight_pt, bias)          # one-time prep
    out = jax.block_until_ready(prepare_for_mha(x, w_kn, b_f32, n_heads, d_heads))
    ref = (x.reshape(-1, d_model) @ weight_pt.T + bias).reshape(
        seq_len, batch, n_heads, d_heads
    )
    assert out.shape == (seq_len, batch, n_heads, d_heads)
    assert jnp.allclose(out, ref, atol=1e-5, rtol=1e-5)

    # --- Test 2: ragged shapes (M % tm != 0 -> masked partial last row block,
    #             n_out=60 -> padded-to-128 weight), no bias ------------------
    seq_len2, batch2, d_model2 = 40, 4, 96
    n_heads2, d_heads2 = 3, 20
    x2 = jax.random.normal(kx2, (seq_len2, batch2, d_model2), jnp.float32)
    weight2_pt, _ = init_params(kp2, d_model2, n_heads2, d_heads2, use_bias=False)
    w2_kn, _ = prepare_params(weight2_pt, None)
    out2 = jax.block_until_ready(
        prepare_for_mha(x2, w2_kn, None, n_heads2, d_heads2, tile_m=64)
    )
    ref2 = (x2.reshape(-1, d_model2) @ weight2_pt.T).reshape(
        seq_len2, batch2, n_heads2, d_heads2
    )
    assert out2.shape == (seq_len2, batch2, n_heads2, d_heads2)
    assert jnp.allclose(out2, ref2, atol=1e-5, rtol=1e-5)

    # --- Test 3: bf16 compute + forced K tiling (accumulator path, 3-D grid) -
    seq_len3, batch3, d_model3 = 8, 2, 256
    n_heads3, d_heads3 = 2, 128
    x3 = jax.random.normal(kx3, (seq_len3, batch3, d_model3), jnp.float32)
    weight3_pt, bias3 = init_params(kp3, d_model3, n_heads3, d_heads3, use_bias=True)
    w3_kn, b3_f32 = prepare_params(weight3_pt, bias3, compute_dtype=jnp.bfloat16)
    out3 = jax.block_until_ready(
        prepare_for_mha(
            x3.astype(jnp.bfloat16), w3_kn, b3_f32, n_heads3, d_heads3, tile_k=128
        )
    )
    ref3 = (x3.reshape(-1, d_model3) @ weight3_pt.T + bias3).reshape(
        seq_len3, batch3, n_heads3, d_heads3
    )
    assert out3.shape == (seq_len3, batch3, n_heads3, d_heads3)
    assert jnp.allclose(out3.astype(jnp.float32), ref3, atol=5e-2, rtol=5e-2)

    print("KERNEL_OK")
</pallas_src>

<mosaic_0001>
module attributes {stable_mosaic.version = 11 : i64} {
  func.func @_linear_kernel(%arg0: i32, %arg1: i32, %arg2: memref<16x128xf32, #tpu.memory_space<vmem>>, %arg3: memref<128x128xf32, #tpu.memory_space<vmem>>, %arg4: memref<1x128xf32, #tpu.memory_space<vmem>>, %arg5: memref<16x128xf32, #tpu.memory_space<vmem>>) attributes {dimension_semantics = [#tpu.dimension_semantics<parallel>, #tpu.dimension_semantics<parallel>], iteration_bounds = array<i64: 1, 1>, scalar_prefetch = 0 : i64, scratch_operands = 0 : i64, tpu.core_type = #tpu.core_type<tc>, window_params = [{transform_indices = @transform_0, window_bounds = array<i64: 16, 128>}, {transform_indices = @transform_1, window_bounds = array<i64: 128, 128>}, {transform_indices = @transform_2, window_bounds = array<i64: 1, 128>}, {transform_indices = @transform_3, window_bounds = array<i64: 16, 128>}]} {
    %c0 = arith.constant 0 : index
    %c0_0 = arith.constant 0 : index
    %0 = vector.load %arg2[%c0, %c0_0] : memref<16x128xf32, #tpu.memory_space<vmem>>, vector<16x128xf32>
    %c0_1 = arith.constant 0 : index
    %c0_2 = arith.constant 0 : index
    %1 = vector.load %arg3[%c0_1, %c0_2] : memref<128x128xf32, #tpu.memory_space<vmem>>, vector<128x128xf32>
    %cst = arith.constant dense<0.000000e+00> : vector<16x128xf32>
    %2 = tpu.matmul %0, %1, %cst {dimension_numbers = #tpu.dot_dimension_numbers<[1], [0], [0], [1], [0, 0, 1, 1], [], []>} : vector<16x128xf32>, vector<128x128xf32>, vector<16x128xf32> -> vector<16x128xf32>
    %c0_3 = arith.constant 0 : index
    %c0_4 = arith.constant 0 : index
    %3 = vector.load %arg4[%c0_3, %c0_4] : memref<1x128xf32, #tpu.memory_space<vmem>>, vector<1x128xf32>
    %4 = vector.broadcast %3 : vector<1x128xf32> to vector<16x128xf32>
    %5 = arith.addf %2, %4 : vector<16x128xf32>
    %c0_5 = arith.constant 0 : index
    %c0_6 = arith.constant 0 : index
    %6 = vector.load %arg5[%c0_5, %c0_6] : memref<16x128xf32, #tpu.memory_space<vmem>>, vector<16x128xf32>
    tpu.vector_store %arg5[%c0_5, %c0_6], %5 {strides = array<i32>} : memref<16x128xf32, #tpu.memory_space<vmem>>, vector<16x128xf32>,
    return
  }
  func.func @transform_0(%arg0: i32, %arg1: i32) -> (i32, i32) {
    %c0_i32 = arith.constant 0 : i32
    %c0_i32_0 = arith.constant 0 : i32
    return %arg0, %c0_i32 : i32, i32
  }
  func.func @transform_1(%arg0: i32, %arg1: i32) -> (i32, i32) {
    %c0_i32 = arith.constant 0 : i32
    %c0_i32_0 = arith.constant 0 : i32
    return %c0_i32, %arg1 : i32, i32
  }
  func.func @transform_2(%arg0: i32, %arg1: i32) -> (i32, i32) {
    %c0_i32 = arith.constant 0 : i32
    %c0_i32_0 = arith.constant 0 : i32
    return %c0_i32, %arg1 : i32, i32
  }
  func.func @transform_3(%arg0: i32, %arg1: i32) -> (i32, i32) {
    %c0_i32 = arith.constant 0 : i32
    return %arg0, %arg1 : i32, i32
  }
}

</mosaic_0001>

<llo_original>
// kernel: tpu_custom_call.1
$region0: #{tpu_custom_call.1}
  #allocation0 [shape = 'u32[]', space=smem, size = 0x4, offset = 0x4, fixed_abs, tag = 'smem constant byte address 0x4 - core index']
  #allocation1 [shape = 'u32[72,128]{1,0:T(1,128)}', space=vmem, size = 0x9000, scoped, tag = 'internal scratch']
  %s0 = inlined_call_operand.hbm [shape: f32[16,128], index: 0, kind: input, shape index: {}]
  %s1 = inlined_call_operand.hbm [shape: f32[128,128], index: 1, kind: input, shape index: {}]
  %s2 = inlined_call_operand.vmem [shape: f32[1,128], index: 2, kind: input, shape index: {}]
  %s3 = inlined_call_operand.hbm [shape: f32[16,128], index: 3, kind: output, shape index: {}]
  %s4 = sld [smem:[#allocation0]]
  $region30: #{tpu_custom_call.1} parent=0
    _
  %s6 = ssub.s32 1, %s4
  %s7 = scalar_select 0, %s6, %s4
  $region1: #{tpu_custom_call.1} parent=0
    #allocation2 [shape = 'u8[8192]{0}', space=vmem, size = 0x2000, scoped, tag = 'input window, operand 0, single buffered']
    #allocation3 [shape = 's32[1]{0}', space=sflag, size = 0x4, scoped, tag = 'scoped memory for tpu_custom_call.1']
    #allocation4 [shape = 's32[1]{0}', space=sflag, size = 0x4, scoped, tag = 'scoped memory for tpu_custom_call.1']
    #allocation5 [shape = 'u8[65536]{0}', space=vmem, size = 0x10000, scoped, tag = 'input window, operand 1, single buffered']
    #allocation6 [shape = 's32[1]{0}', space=sflag, size = 0x4, scoped, tag = 'scoped memory for tpu_custom_call.1']
    #allocation7 [shape = 'u8[8192]{0}', space=vmem, size = 0x2000, scoped, tag = 'output window, operand 0, single buffered']
    %8 = vsyncpa [#allocation3], 0
    %9 = vsyncpa [#allocation6], 0
    %10 = vsyncpa [#allocation4], 0
    // Predicated region
    $region2: #{tpu_custom_call.1} parent=1 // pred_check
      _
    $region3: #{tpu_custom_call.1} parent=1 // pred_check_branch
      %12 = sbr.rel (0) target = $region5
    $region4: #{tpu_custom_call.1} parent=1 // pred_region
      %14 = vsyncadd [#allocation3], 0
      %s15 = sshll.u32 %s0, 4
      %s16 = int_to_ptr.hbm [resolvable:$true] %s15
      %s17 = sshll.u32 [#allocation2], 4
      %s18 = int_to_ptr.vmem [resolvable:$true] %s17
      %23 = dma.hbm_to_vmem [thread:$0]  %s16, 256, %s18, [#allocation3], 128, 128, 8
    $region5: #{tpu_custom_call.1} parent=1 // pred_fallthru
      _
    // Predicated region
    $region6: #{tpu_custom_call.1} parent=1 // pred_check
      _
    $region7: #{tpu_custom_call.1} parent=1 // pred_check_branch
      %25 = sbr.rel (0) target = $region9
    $region8: #{tpu_custom_call.1} parent=1 // pred_region
      %27 = vsyncadd [#allocation6], 0
      %s28 = sshll.u32 %s1, 4
      %s29 = int_to_ptr.hbm [resolvable:$true] %s28
      %s30 = sshll.u32 [#allocation5], 4
      %s31 = int_to_ptr.vmem [resolvable:$true] %s30
      %36 = dma.hbm_to_vmem [thread:$0]  %s29, 2048, %s31, [#allocation6], 128, 128, 8
    $region9: #{tpu_custom_call.1} parent=1 // pred_fallthru
      _
    // Predicated region
    $region10: #{tpu_custom_call.1} parent=1 // pred_check
      _
    $region11: #{tpu_custom_call.1} parent=1 // pred_check_branch
      %38 = sbr.rel (0) target = $region13
    $region12: #{tpu_custom_call.1} parent=1 // pred_region
      _
    $region13: #{tpu_custom_call.1} parent=1 // pred_fallthru
      _
    // Predicated region
    $region14: #{tpu_custom_call.1} parent=1 // pred_check
      _
    $region15: #{tpu_custom_call.1} parent=1 // pred_check_branch
      %40 = sbr.rel (0) target = $region17
    $region16: #{tpu_custom_call.1} parent=1 // pred_region
      %42 = dma.done [#allocation3], 256
    $region17: #{tpu_custom_call.1} parent=1 // pred_fallthru
      _
    // Predicated region
    $region18: #{tpu_custom_call.1} parent=1 // pred_check
      _
    $region19: #{tpu_custom_call.1} parent=1 // pred_check_branch
      %44 = sbr.rel (0) target = $region21
    $region20: #{tpu_custom_call.1} parent=1 // pred_region
      %46 = dma.done [#allocation6], 2048
    $region21: #{tpu_custom_call.1} parent=1 // pred_fallthru
      _
    %v47 = vld [vmem:[#allocation2] sm:$0xff]
    %v48 = vld [vmem:[#allocation2 + $0x8] sm:$0xff]
    %v49 = vld [vmem:[#allocation5] sm:$0xff]
    %v50 = vld [vmem:[#allocation5 + $0x8] sm:$0xff]
    %v51 = vld [vmem:[#allocation5 + $0x10] sm:$0xff]
    %v52 = vld [vmem:[#allocation5 + $0x18] sm:$0xff]
    %v53 = vld [vmem:[#allocation5 + $0x20] sm:$0xff]
    %v54 = vld [vmem:[#allocation5 + $0x28] sm:$0xff]
    %v55 = vld [vmem:[#allocation5 + $0x30] sm:$0xff]
    %v56 = vld [vmem:[#allocation5 + $0x38] sm:$0xff]
    %v57 = vld [vmem:[#allocation5 + $0x40] sm:$0xff]
    %v58 = vld [vmem:[#allocation5 + $0x48] sm:$0xff]
    %v59 = vld [vmem:[#allocation5 + $0x50] sm:$0xff]
    %v60 = vld [vmem:[#allocation5 + $0x58] sm:$0xff]
    %v61 = vld [vmem:[#allocation5 + $0x60] sm:$0xff]
    %v62 = vld [vmem:[#allocation5 + $0x68] sm:$0xff]
    %v63 = vld [vmem:[#allocation5 + $0x70] sm:$0xff]
    %v64 = vld [vmem:[#allocation5 + $0x78] sm:$0xff]
    %v65 = vld [vmem:[%s2] sm:$0x1]
    %v67 = vperm.slane %v65, 0
    %69 = vmatpush.msra.mxu0 %v64
    %70 = vmatpush.msra.mxu0 %v63
    %71 = vmatpush.msra.mxu0 %v62
    %72 = vmatpush.msra.mxu0 %v61
    %73 = vmatpush.msra.mxu0 %v60
    %74 = vmatpush.msra.mxu0 %v59
    %75 = vmatpush.msra.mxu0 %v58
    %76 = vmatpush.msra.mxu0 %v57
    %77 = vmatpush.msra.mxu0 %v56
    %78 = vmatpush.msra.mxu0 %v55
    %79 = vmatpush.msra.mxu0 %v54
    %80 = vmatpush.msra.mxu0 %v53
    %81 = vmatpush.msra.mxu0 %v52
    %82 = vmatpush.msra.mxu0 %v51
    %83 = vmatpush.msra.mxu0 %v50
    %84 = vmatpush.msra.mxu0 %v49
    %85 = vmatmul.f32.gmra.mxu0 %v47
    %v86 = vpop.f32.mrf.mxu0
    %v87 = vadd.f32 %v67, %v86
    %88 = vmatmul.f32.gmra.mxu0 %v48
    %v89 = vpop.f32.mrf.mxu0
    %v90 = vadd.f32 %v67, %v89
    %91 = vdwg.mxu0
    %92 = vst [vmem:[#allocation7] sm:$0xff] %v87
    %93 = vst [vmem:[#allocation7 + $0x8] sm:$0xff] %v90
    // Predicated region
    $region22: #{tpu_custom_call.1} parent=1 // pred_check
      _
    $region23: #{tpu_custom_call.1} parent=1 // pred_check_branch
      %95 = sbr.rel (0) target = $region25
    $region24: #{tpu_custom_call.1} parent=1 // pred_region
      %97 = vsyncadd [#allocation4], 0
      %s98 = sshll.u32 [#allocation7], 4
      %s99 = int_to_ptr.vmem [resolvable:$true] %s98
      %s100 = sshll.u32 %s3, 4
      %s101 = int_to_ptr.hbm [resolvable:$true] %s100
      %106 = dma.vmem_to_hbm [thread:$0]  %s99, 256, %s101, [#allocation4], 128, 128, 8
    $region25: #{tpu_custom_call.1} parent=1 // pred_fallthru
      _
    // Predicated region
    $region26: #{tpu_custom_call.1} parent=1 // pred_check
      _
    $region27: #{tpu_custom_call.1} parent=1 // pred_check_branch
      %108 = sbr.rel (0) target = $region29
    $region28: #{tpu_custom_call.1} parent=1 // pred_region
      %110 = dma.done [#allocation4], 256
    $region29: #{tpu_custom_call.1} parent=1 // pred_fallthru
      _
    %111 = vsyncpa [#allocation3], 1
    %112 = vsyncpa [#allocation6], 1
    %113 = vsyncpa [#allocation4], 1

</llo_original>
